<compile_context>
chip_gen: v5e
topology: v5e:2x2
jax: 0.10.0
libtpu: 0.0.40
codegen_flags: <defaults>
</compile_context>

<pallas_src>
import functools

import jax
import jax.numpy as jnp
from jax.experimental import pallas as pl
from jax.experimental.pallas import tpu as pltpu

_LANE = 128
_SUBLANE = 8


def _round_up(x, m):
    return (x + m - 1) // m * m


def _net_kernel(x_ref, w1b_ref, w2b_ref, o_ref, *, s, h_pad):
    # x_ref:   (TB, S)              -- un-padded features, K = S
    # w1b_ref: (round_up(S+1,8), H_pad)   rows [0:S] = w1^T, row S = b1
    # w2b_ref: (H_pad + 8, A_pad)         rows [0:H_pad] = w2^T (zero-padded), row H_pad = b2
    x = x_ref[...]

    w1 = w1b_ref[0:s, :]                   # (S, H_pad)   static slice
    b1 = w1b_ref[s:s + 1, :]               # (1, H_pad)
    h = jnp.dot(x, w1, preferred_element_type=jnp.float32) + b1
    h = jnp.maximum(h, 0.0)                # padded hidden cols stay 0

    w2 = w2b_ref[0:h_pad, :]               # (H_pad, A_pad)
    b2 = w2b_ref[h_pad:h_pad + 1, :]       # (1, A_pad)
    y = jnp.dot(h, w2, preferred_element_type=jnp.float32) + b2
    o_ref[...] = y.astype(o_ref.dtype)     # lane-dense (TB, A_pad) store


def pack_net_params(w1, b1, w2, b2):
    """One-time packing of PyTorch-layout Linear params into kernel buffers.

    w1: (H, S), b1: (H,), w2: (A, H), b2: (A,)   (nn.Linear weight layout)
    Returns (w1b, w2b):
      w1b: (round_up(S+1, 8), H_pad)  rows [0:S] = w1^T, row S = b1
      w2b: (H_pad + 8,       A_pad)   rows [0:H_pad] = w2^T, row H_pad = b2
    """
    H, S = w1.shape
    A = w2.shape[0]
    H_pad = _round_up(H, _LANE)
    A_pad = _round_up(A, _LANE)
    f32 = jnp.float32

    w1b = jnp.zeros((_round_up(S + 1, _SUBLANE), H_pad), f32)
    w1b = w1b.at[:S, :H].set(w1.T.astype(f32))
    w1b = w1b.at[S, :H].set(b1.astype(f32))

    w2b = jnp.zeros((H_pad + _SUBLANE, A_pad), f32)
    w2b = w2b.at[:H, :A].set(w2.T.astype(f32))
    w2b = w2b.at[H_pad, :A].set(b2.astype(f32))
    return w1b, w2b


@functools.partial(jax.jit, static_argnames=("n_actions",))
def _forward_impl(x, w1b, w2b, *, n_actions):
    B, S = x.shape
    H_pad = w2b.shape[0] - _SUBLANE
    A_pad = w2b.shape[1]

    # Batch tiling: 1 step for tiny inference batches; exactly 2 steps for
    # larger (training) batches so v7x's two TensorCores each take one step.
    n_steps = 2 if B >= 64 else 1
    TB = _round_up(pl.cdiv(B, n_steps), _SUBLANE)
    B_pad = TB * n_steps
    x_p = jnp.pad(x.astype(jnp.float32), ((0, B_pad - B), (0, 0)))

    kernel = functools.partial(_net_kernel, s=S, h_pad=H_pad)

    out = pl.pallas_call(
        kernel,
        out_shape=jax.ShapeDtypeStruct((B_pad, A_pad), jnp.float32),
        grid=(n_steps,),
        in_specs=[
            # x: tiled over batch; last block dim == full array dim (S), so
            # the (8,128) constraint is satisfied without feature padding.
            pl.BlockSpec((TB, S), lambda i: (i, 0)),
            # weights + folded biases: same block every step -> VMEM-resident.
            pl.BlockSpec((w1b.shape[0], H_pad), lambda i: (0, 0)),
            pl.BlockSpec((w2b.shape[0], A_pad), lambda i: (0, 0)),
        ],
        out_specs=pl.BlockSpec((TB, A_pad), lambda i: (i, 0)),
        compiler_params=pltpu.CompilerParams(
            dimension_semantics=("parallel",),
        ),
    )(x_p, w1b, w2b)

    return out[:B, :n_actions]


class PallasNet:
    """Caches packed weights; forward = jitted pad -> pallas_call -> slice."""

    def __init__(self, w1, b1, w2, b2):
        self.n_states = w1.shape[1]
        self.n_actions = w2.shape[0]
        self.w1b, self.w2b = pack_net_params(w1, b1, w2, b2)

    def __call__(self, x):
        assert x.shape[-1] == self.n_states
        return _forward_impl(x, self.w1b, self.w2b, n_actions=self.n_actions)


def net_forward(x, w1, b1, w2, b2):
    """Convenience one-shot API (packs weights on every call; prefer PallasNet)."""
    w1b, w2b = pack_net_params(w1, b1, w2, b2)
    return _forward_impl(x, w1b, w2b, n_actions=w2.shape[0])


def init_net_params(key, n_states, n_neuron, n_actions):
    """Deterministic init mimicking nn.Linear defaults (U(-1/sqrt(fan_in), +))."""
    k1, k2, k3, k4 = jax.random.split(key, 4)
    lim1 = 1.0 / (n_states ** 0.5)
    lim2 = 1.0 / (n_neuron ** 0.5)
    w1 = jax.random.uniform(k1, (n_neuron, n_states), jnp.float32, -lim1, lim1)
    b1 = jax.random.uniform(k2, (n_neuron,), jnp.float32, -lim1, lim1)
    w2 = jax.random.uniform(k3, (n_actions, n_neuron), jnp.float32, -lim2, lim2)
    b2 = jax.random.uniform(k4, (n_actions,), jnp.float32, -lim2, lim2)
    return w1, b1, w2, b2


def _reference(x, w1, b1, w2, b2):
    return jnp.maximum(x @ w1.T + b1, 0.0) @ w2.T + b2


if __name__ == "__main__":
    # DQN-ish shapes: n_states=4 (CartPole), hidden=32, 2 actions.
    n_states, n_neuron, n_actions = 4, 32, 2

    key = jax.random.PRNGKey(0)
    kx, kp, kx2 = jax.random.split(key, 3)
    w1, b1, w2, b2 = init_net_params(kp, n_states, n_neuron, n_actions)

    net = PallasNet(w1, b1, w2, b2)   # weights packed once, reused below

    # Small inference-style batch (1 grid step).
    batch = 8
    x = jax.random.normal(kx, (batch, n_states), jnp.float32)
    out = jax.block_until_ready(net(x))
    ref = _reference(x, w1, b1, w2, b2)
    assert out.shape == (batch, n_actions)
    assert jnp.allclose(out, ref, atol=1e-5, rtol=1e-5)

    # Second call at the same shape hits the jit cache (no re-pack, no re-trace).
    out_again = jax.block_until_ready(net(x))
    assert jnp.allclose(out_again, ref, atol=1e-5, rtol=1e-5)

    # Larger training-style batch (2-step parallel grid + batch padding/slicing).
    batch2 = 300
    x2 = jax.random.normal(kx2, (batch2, n_states), jnp.float32)
    out2 = jax.block_until_ready(net(x2))
    ref2 = _reference(x2, w1, b1, w2, b2)
    assert out2.shape == (batch2, n_actions)
    assert jnp.allclose(out2, ref2, atol=1e-5, rtol=1e-5)

    print("KERNEL_OK")
</pallas_src>

<mosaic_0001>
module attributes {stable_mosaic.version = 11 : i64} {
  func.func @_net_kernel(%arg0: i32, %arg1: memref<8x4xf32, #tpu.memory_space<vmem>>, %arg2: memref<8x128xf32, #tpu.memory_space<vmem>>, %arg3: memref<136x128xf32, #tpu.memory_space<vmem>>, %arg4: memref<8x128xf32, #tpu.memory_space<vmem>>) attributes {dimension_semantics = [#tpu.dimension_semantics<parallel>], iteration_bounds = array<i64: 1>, scalar_prefetch = 0 : i64, scratch_operands = 0 : i64, tpu.core_type = #tpu.core_type<tc>, window_params = [{transform_indices = @transform_0, window_bounds = array<i64: 8, 4>}, {pipeline_mode = #tpu.pipeline_mode<synchronous>, transform_indices = @transform_1, window_bounds = array<i64: 8, 128>}, {pipeline_mode = #tpu.pipeline_mode<synchronous>, transform_indices = @transform_2, window_bounds = array<i64: 136, 128>}, {transform_indices = @transform_3, window_bounds = array<i64: 8, 128>}]} {
    %c0 = arith.constant 0 : index
    %c0_0 = arith.constant 0 : index
    %0 = vector.load %arg1[%c0, %c0_0] : memref<8x4xf32, #tpu.memory_space<vmem>>, vector<8x4xf32>
    %c0_1 = arith.constant 0 : index
    %c0_2 = arith.constant 0 : index
    %1 = vector.load %arg2[%c0_1, %c0_2] : memref<8x128xf32, #tpu.memory_space<vmem>>, vector<4x128xf32>
    %c4 = arith.constant 4 : index
    %c0_3 = arith.constant 0 : index
    %2 = vector.load %arg2[%c4, %c0_3] : memref<8x128xf32, #tpu.memory_space<vmem>>, vector<1x128xf32>
    %cst = arith.constant dense<0.000000e+00> : vector<8x128xf32>
    %3 = tpu.matmul %0, %1, %cst {dimension_numbers = #tpu.dot_dimension_numbers<[1], [0], [0], [1], [0, 0, 1, 1], [], []>} : vector<8x4xf32>, vector<4x128xf32>, vector<8x128xf32> -> vector<8x128xf32>
    %4 = vector.broadcast %2 : vector<1x128xf32> to vector<8x128xf32>
    %5 = arith.addf %3, %4 : vector<8x128xf32>
    %cst_4 = arith.constant 0.000000e+00 : f32
    %6 = vector.broadcast %cst_4 : f32 to vector<8x128xf32>
    %7 = arith.maximumf %5, %6 : vector<8x128xf32>
    %c0_5 = arith.constant 0 : index
    %c0_6 = arith.constant 0 : index
    %8 = vector.load %arg3[%c0_5, %c0_6] : memref<136x128xf32, #tpu.memory_space<vmem>>, vector<128x128xf32>
    %c128 = arith.constant 128 : index
    %c0_7 = arith.constant 0 : index
    %9 = vector.load %arg3[%c128, %c0_7] : memref<136x128xf32, #tpu.memory_space<vmem>>, vector<1x128xf32>
    %cst_8 = arith.constant dense<0.000000e+00> : vector<8x128xf32>
    %10 = tpu.matmul %7, %8, %cst_8 {dimension_numbers = #tpu.dot_dimension_numbers<[1], [0], [0], [1], [0, 0, 1, 1], [], []>} : vector<8x128xf32>, vector<128x128xf32>, vector<8x128xf32> -> vector<8x128xf32>
    %11 = vector.broadcast %9 : vector<1x128xf32> to vector<8x128xf32>
    %12 = arith.addf %10, %11 : vector<8x128xf32>
    %c0_9 = arith.constant 0 : index
    %c0_10 = arith.constant 0 : index
    %13 = vector.load %arg4[%c0_9, %c0_10] : memref<8x128xf32, #tpu.memory_space<vmem>>, vector<8x128xf32>
    tpu.vector_store %arg4[%c0_9, %c0_10], %12 {strides = array<i32>} : memref<8x128xf32, #tpu.memory_space<vmem>>, vector<8x128xf32>,
    return
  }
  func.func @transform_0(%arg0: i32) -> (i32, i32) {
    %c0_i32 = arith.constant 0 : i32
    %c0_i32_0 = arith.constant 0 : i32
    return %arg0, %c0_i32 : i32, i32
  }
  func.func @transform_1(%arg0: i32) -> (i32, i32) {
    %c0_i32 = arith.constant 0 : i32
    %c0_i32_0 = arith.constant 0 : i32
    %c0_i32_1 = arith.constant 0 : i32
    return %c0_i32, %c0_i32_0 : i32, i32
  }
  func.func @transform_2(%arg0: i32) -> (i32, i32) {
    %c0_i32 = arith.constant 0 : i32
    %c0_i32_0 = arith.constant 0 : i32
    %c0_i32_1 = arith.constant 0 : i32
    return %c0_i32, %c0_i32_0 : i32, i32
  }
  func.func @transform_3(%arg0: i32) -> (i32, i32) {
    %c0_i32 = arith.constant 0 : i32
    %c0_i32_0 = arith.constant 0 : i32
    return %arg0, %c0_i32 : i32, i32
  }
}

</mosaic_0001>

<llo_original>
// kernel: _forward_impl.1
$region0: #{_forward_impl.1}
  #allocation0 [shape = 'u32[]', space=smem, size = 0x4, offset = 0x4, fixed_abs, tag = 'smem constant byte address 0x4 - core index']
  #allocation1 [shape = 'u32[72,128]{1,0:T(1,128)}', space=vmem, size = 0x9000, scoped, tag = 'internal scratch']
  %s0 = inlined_call_operand.vmem [shape: f32[8,4], index: 0, kind: input, shape index: {}]
  %s1 = inlined_call_operand.vmem [shape: f32[8,128], index: 1, kind: input, shape index: {}]
  %s2 = inlined_call_operand.hbm [shape: f32[136,128], index: 2, kind: input, shape index: {}]
  %s3 = inlined_call_operand.vmem [shape: f32[8,128], index: 3, kind: output, shape index: {}]
  %s4 = sld [smem:[#allocation0]]
  $region26: #{_forward_impl.1} parent=0
    _
  %s6 = ssub.s32 1, %s4
  %s7 = scalar_select 0, %s6, %s4
  $region1: #{_forward_impl.1} parent=0
    #allocation2 [shape = 'u8[69632]{0}', space=vmem, size = 0x11000, scoped, tag = 'input window, operand 2, single buffered']
    #allocation3 [shape = 's32[1]{0}', space=sflag, size = 0x4, scoped, tag = 'scoped memory for _forward_impl.1']
    %8 = vsyncpa [#allocation3], 0
    // Predicated region
    $region2: #{_forward_impl.1} parent=1 // pred_check
      _
    $region3: #{_forward_impl.1} parent=1 // pred_check_branch
      %10 = sbr.rel (0) target = $region5
    $region4: #{_forward_impl.1} parent=1 // pred_region
      _
    $region5: #{_forward_impl.1} parent=1 // pred_fallthru
      _
    // Predicated region
    $region6: #{_forward_impl.1} parent=1 // pred_check
      _
    $region7: #{_forward_impl.1} parent=1 // pred_check_branch
      %12 = sbr.rel (0) target = $region9
    $region8: #{_forward_impl.1} parent=1 // pred_region
      _
    $region9: #{_forward_impl.1} parent=1 // pred_fallthru
      _
    // Predicated region
    $region10: #{_forward_impl.1} parent=1 // pred_check
      _
    $region11: #{_forward_impl.1} parent=1 // pred_check_branch
      %14 = sbr.rel (0) target = $region13
    $region12: #{_forward_impl.1} parent=1 // pred_region
      %16 = vsyncadd [#allocation3], 0
      %s17 = sshll.u32 %s2, 4
      %s18 = int_to_ptr.hbm [resolvable:$true] %s17
      %s19 = sshll.u32 [#allocation2], 4
      %s20 = int_to_ptr.vmem [resolvable:$true] %s19
      %25 = dma.hbm_to_vmem [thread:$0]  %s18, 2176, %s20, [#allocation3], 128, 128, 8
    $region13: #{_forward_impl.1} parent=1 // pred_fallthru
      _
    // Predicated region
    $region14: #{_forward_impl.1} parent=1 // pred_check
      _
    $region15: #{_forward_impl.1} parent=1 // pred_check_branch
      %27 = sbr.rel (0) target = $region17
    $region16: #{_forward_impl.1} parent=1 // pred_region
      %29 = dma.done [#allocation3], 2176
    $region17: #{_forward_impl.1} parent=1 // pred_fallthru
      _
    %v30 = vld [vmem:[%s0] sm:$0xff]
    %v31 = vld [vmem:[%s1] sm:$0xf]
    %v32 = vld [vmem:[%s1 + $0x4] sm:$0x1]
    %v33 = vperm.slane %v32, 0
    %vm34 = vcmask 31744
    %v36 = vsel %vm34, %v30, 0
    %vm38 = vcmask 1043456
    %v40 = vsel %vm38, %v31, 0
    %42 = vmatpush.msra.mxu0 0.0
    %43 = vmatpush.msra.mxu0 0.0
    %44 = vmatpush.msra.mxu0 0.0
    %45 = vmatpush.msra.mxu0 0.0
    %46 = vmatpush.msra.mxu0 0.0
    %47 = vmatpush.msra.mxu0 0.0
    %48 = vmatpush.msra.mxu0 0.0
    %49 = vmatpush.msra.mxu0 0.0
    %50 = vmatpush.msra.mxu0 0.0
    %51 = vmatpush.msra.mxu0 0.0
    %52 = vmatpush.msra.mxu0 0.0
    %53 = vmatpush.msra.mxu0 0.0
    %54 = vmatpush.msra.mxu0 0.0
    %55 = vmatpush.msra.mxu0 0.0
    %56 = vmatpush.msra.mxu0 0.0
    %57 = vmatpush.msra.mxu0 %v40
    %58 = vmatmul.f32.gmra.mxu0 %v36
    %v59 = vpop.f32.mrf.mxu0
    %v60 = vadd.f32 %v33, %v59
    %61 = vdwg.mxu0
    %v62 = vmax.f32 %v60, 0.0
    %v63 = vld [vmem:[#allocation2] sm:$0xff]
    %v64 = vld [vmem:[#allocation2 + $0x8] sm:$0xff]
    %v65 = vld [vmem:[#allocation2 + $0x10] sm:$0xff]
    %v66 = vld [vmem:[#allocation2 + $0x18] sm:$0xff]
    %v67 = vld [vmem:[#allocation2 + $0x20] sm:$0xff]
    %v68 = vld [vmem:[#allocation2 + $0x28] sm:$0xff]
    %v69 = vld [vmem:[#allocation2 + $0x30] sm:$0xff]
    %v70 = vld [vmem:[#allocation2 + $0x38] sm:$0xff]
    %v71 = vld [vmem:[#allocation2 + $0x40] sm:$0xff]
    %v72 = vld [vmem:[#allocation2 + $0x48] sm:$0xff]
    %v73 = vld [vmem:[#allocation2 + $0x50] sm:$0xff]
    %v74 = vld [vmem:[#allocation2 + $0x58] sm:$0xff]
    %v75 = vld [vmem:[#allocation2 + $0x60] sm:$0xff]
    %v76 = vld [vmem:[#allocation2 + $0x68] sm:$0xff]
    %v77 = vld [vmem:[#allocation2 + $0x70] sm:$0xff]
    %v78 = vld [vmem:[#allocation2 + $0x78] sm:$0xff]
    %v79 = vld [vmem:[#allocation2 + $0x80] sm:$0x1]
    %v80 = vperm.slane %v79, 0
    %81 = vmatpush.msra.mxu0 %v78
    %82 = vmatpush.msra.mxu0 %v77
    %83 = vmatpush.msra.mxu0 %v76
    %84 = vmatpush.msra.mxu0 %v75
    %85 = vmatpush.msra.mxu0 %v74
    %86 = vmatpush.msra.mxu0 %v73
    %87 = vmatpush.msra.mxu0 %v72
    %88 = vmatpush.msra.mxu0 %v71
    %89 = vmatpush.msra.mxu0 %v70
    %90 = vmatpush.msra.mxu0 %v69
    %91 = vmatpush.msra.mxu0 %v68
    %92 = vmatpush.msra.mxu0 %v67
    %93 = vmatpush.msra.mxu0 %v66
    %94 = vmatpush.msra.mxu0 %v65
    %95 = vmatpush.msra.mxu0 %v64
    %96 = vmatpush.msra.mxu0 %v63
    %97 = vmatmul.f32.gmra.mxu0 %v62
    %v98 = vpop.f32.mrf.mxu0
    %v99 = vadd.f32 %v80, %v98
    %100 = vdwg.mxu0
    %101 = vst [vmem:[%s3] sm:$0xff] %v99
    // Predicated region
    $region18: #{_forward_impl.1} parent=1 // pred_check
      _
    $region19: #{_forward_impl.1} parent=1 // pred_check_branch
      %103 = sbr.rel (0) target = $region21
    $region20: #{_forward_impl.1} parent=1 // pred_region
      _
    $region21: #{_forward_impl.1} parent=1 // pred_fallthru
      _
    // Predicated region
    $region22: #{_forward_impl.1} parent=1 // pred_check
      _
    $region23: #{_forward_impl.1} parent=1 // pred_check_branch
      %105 = sbr.rel (0) target = $region25
    $region24: #{_forward_impl.1} parent=1 // pred_region
      _
    $region25: #{_forward_impl.1} parent=1 // pred_fallthru
      _
    %106 = vsyncpa [#allocation3], 1

</llo_original>
